<compile_context>
chip_gen: v5e
topology: v5e:2x2
jax: 0.10.0
libtpu: 0.0.40
codegen_flags: <defaults>
</compile_context>

<pallas_src>
import functools
import math

import jax
import jax.numpy as jnp
from jax.experimental import pallas as pl
from jax.experimental.pallas import tpu as pltpu

LANE = 128              # vreg lane width (last dim of every block)
TM_MAX = 4096           # rows per block -> (4096, 128) f32 = 2 MiB per input block
NCORE = 2               # leading "parallel" axis (v7x dual-TC; dup tiles are masked)
VMEM_LIMIT = 40 << 20   # 3 inputs x 2 buffers x 2 MiB = 12 MiB << 40 MiB


def _fold_rows(x, tm):
    """Reduce a (tm, LANE) block to a vreg-sized partial using only VPU adds."""
    if tm >= 8 and tm % 8 == 0:
        # (tm,128) -> (tm//8, 8, 128) matches the sublane tiling (no relayout);
        # the axis-0 sum is tm//8-1 vector adds into one (8,128) vreg.
        return x.reshape(tm // 8, 8, LANE).sum(axis=0)
    # tiny single-tile fallback (tm == rows < 8 or not a multiple of 8)
    return jnp.sum(x, axis=0, keepdims=True)


def _sse_kernel(*refs, rows, inv_k, b, tm, inner, last_tile, weighted):
    """Accumulate sum([w *] (pred - (score - b)/k)^2) over row tiles.

    grid = (NCORE, inner): axis 0 "parallel" (one slice per TensorCore),
    axis 1 the sequential reduction. Each core writes a lane-wise partial sum
    into its own (1, 1, 128) output block; the wrapper sums them.
    """
    if weighted:
        pred_ref, score_ref, w_ref, o_ref, acc_ref = refs
    else:
        pred_ref, score_ref, o_ref, acc_ref = refs
        w_ref = None

    c = pl.program_id(0)
    j = pl.program_id(1)

    @pl.when(j == 0)
    def _():
        acc_ref[...] = jnp.zeros_like(acc_ref)

    # Cast on the VMEM block; HBM traffic stays in the native dtype.
    pred = pred_ref[...].astype(jnp.float32)
    score = score_ref[...].astype(jnp.float32)
    d = pred - (score - b) * inv_k
    contrib = d * d
    if weighted:
        contrib = w_ref[...].astype(jnp.float32) * contrib

    tile = c * inner + j  # un-clamped logical row-tile index

    @pl.when(tile < last_tile)
    def _():
        # Steady state: no masking work at all (pure streaming VPU).
        acc_ref[...] += _fold_rows(contrib, tm)

    @pl.when(tile >= last_tile)
    def _():
        # Last (possibly partial) tile, plus fully-masked clamped duplicates of
        # the other core when it runs out of tiles. Row-level mask only: the
        # 128-aligned prefix guarantees every valid row is fully valid.
        row_idx = tile * tm + jax.lax.broadcasted_iota(jnp.int32, (tm, LANE), 0)
        masked = jnp.where(row_idx < rows, contrib, 0.0)
        acc_ref[...] += _fold_rows(masked, tm)

    @pl.when(j == pl.num_programs(1) - 1)
    def _():
        # Single cross-sublane reduction per core, once, at the end.
        o_ref[...] = jnp.sum(acc_ref[...], axis=0, keepdims=True).reshape(o_ref.shape)


@functools.partial(jax.jit, static_argnames=("k", "b"))
def _sse_pallas(pred, score, weight, *, k, b):
    """Fused Pallas reduction of sum([weight *] (pred - (score - b)/k)^2).

    `pred`, `score` (and `weight` if not None) are same-shape arrays of any
    rank/dtype. `weight=None` selects the unweighted kernel (no ones stream).
    """
    inv_k = 1.0 / float(k)
    b = float(b)
    weighted = weight is not None

    n = pred.size
    p1 = pred.reshape(-1)
    s1 = score.reshape(-1)
    w1 = weight.reshape(-1) if weighted else None

    rows = n // LANE
    n_main = rows * LANE
    rem = n - n_main

    total = jnp.float32(0.0)

    if rem:
        # <128-element ragged tail handled in plain JAX instead of padding the
        # full arrays (avoids an extra HBM pass over every input).
        dp = p1[n_main:].astype(jnp.float32) - (s1[n_main:].astype(jnp.float32) - b) * inv_k
        tail = dp * dp
        if weighted:
            tail = w1[n_main:].astype(jnp.float32) * tail
        total = total + jnp.sum(tail)

    if rows == 0:
        return total

    def view(x):
        xs = x[:n_main] if rem else x
        return xs.reshape(rows, LANE)

    p2, s2 = view(p1), view(s1)
    w2 = view(w1) if weighted else None

    tm = TM_MAX if rows > TM_MAX else rows        # block never exceeds the array
    tiles = pl.cdiv(rows, tm)
    inner = pl.cdiv(tiles, NCORE)
    last_tile = tiles - 1
    acc_rows = 8 if (tm >= 8 and tm % 8 == 0) else 1

    def in_map(c, j):
        # Clamp fully-out-of-range tiles back in bounds; their contribution is
        # masked to zero inside the kernel (tile index stays un-clamped there).
        return (jnp.minimum(c * inner + j, last_tile), 0)

    kernel = functools.partial(
        _sse_kernel, rows=rows, inv_k=inv_k, b=b, tm=tm, inner=inner,
        last_tile=last_tile, weighted=weighted)

    inputs = (p2, s2, w2) if weighted else (p2, s2)
    in_specs = [pl.BlockSpec((tm, LANE), in_map) for _ in inputs]
    bytes_accessed = int(sum(x.size * x.dtype.itemsize for x in inputs)
                         + NCORE * LANE * 4)

    partials = pl.pallas_call(
        kernel,
        out_shape=jax.ShapeDtypeStruct((NCORE, 1, LANE), jnp.float32),
        grid_spec=pltpu.PrefetchScalarGridSpec(
            num_scalar_prefetch=0,
            grid=(NCORE, inner),
            in_specs=in_specs,
            out_specs=pl.BlockSpec((1, 1, LANE), lambda c, j: (c, 0, 0)),
            scratch_shapes=[pltpu.VMEM((acc_rows, LANE), jnp.float32)],
        ),
        compiler_params=pltpu.CompilerParams(
            dimension_semantics=("parallel", "arbitrary"),
            vmem_limit_bytes=VMEM_LIMIT,
        ),
        cost_estimate=pl.CostEstimate(
            flops=(6 if weighted else 5) * n_main, transcendentals=0,
            bytes_accessed=bytes_accessed),
    )(*inputs)

    return total + jnp.sum(partials)


def _prepare(pred, score, weight):
    """PyTorch semantics: squeeze(pred) then broadcast. Broadcasts are only
    materialized when the shapes genuinely differ."""
    pred_s = jnp.squeeze(pred)
    shapes = [jnp.shape(pred_s), jnp.shape(score)]
    if weight is not None:
        shapes.append(jnp.shape(weight))
    shape = jnp.broadcast_shapes(*shapes)

    def bcast(x):
        # TODO(synk): genuinely smaller (broadcast) operands are materialized in
        # HBM here; an in-kernel stride-0 replicate would avoid that copy.
        return x if jnp.shape(x) == shape else jnp.broadcast_to(x, shape)

    pred_s = bcast(pred_s)
    score_b = bcast(jnp.asarray(score))
    weight_b = bcast(jnp.asarray(weight)) if weight is not None else None
    return pred_s, score_b, weight_b, math.prod(shape)


class ScoreLoss:
    """JAX port of ScoreLoss: MSE(outputs.squeeze(), (targets - b)/k)."""

    def __init__(self, k=1, b=0, reduction='mean'):
        self.k, self.b = k, b
        self.reduction = reduction

    def __call__(self, outputs, targets):
        if self.reduction == 'none':
            # Unreduced elementwise path (how WeightScoreLoss composes it).
            adj = (targets - self.b) / self.k
            d = jnp.squeeze(outputs) - adj
            return d * d
        pred_b, score_b, _, n = _prepare(outputs, targets, None)
        sse = _sse_pallas(pred_b, score_b, None, k=float(self.k), b=float(self.b))
        if self.reduction == 'mean':
            return sse / jnp.float32(n)
        return sse  # 'sum'


class WeightScoreLoss:
    """JAX/Pallas port of WeightScoreLoss: weight * squared error, reduced."""

    def __init__(self, k=1, b=0, reduction='mean', weight_name='weight',
                 score_name='score', pred_score_name='score'):
        self.score_loss = ScoreLoss(k=k, b=b, reduction='none')
        self.k, self.b = k, b
        self.reduction = reduction
        self.weight_name = weight_name
        self.score_name = score_name
        self.pred_score_name = pred_score_name

    def __call__(self, outputs, targets):
        weight = targets[self.weight_name]
        pred = outputs[self.pred_score_name]
        score = targets[self.score_name]

        if self.reduction == 'none':
            # TODO(synk): unreduced path returns the full elementwise tensor;
            # it stays in plain JAX (the fused reduce kernel does not apply).
            return weight * self.score_loss(pred, score)

        pred_b, score_b, weight_b, n = _prepare(pred, score, weight)
        sse = _sse_pallas(pred_b, score_b, weight_b,
                          k=float(self.k), b=float(self.b))
        if self.reduction == 'mean':
            return sse / jnp.float32(n)
        elif self.reduction == 'sum':
            return sse


if __name__ == "__main__":
    key = jax.random.PRNGKey(0)

    def make_inputs(n, subkey):
        k1, k2, k3 = jax.random.split(subkey, 3)
        outputs = {"score": jax.random.normal(k1, (n, 1), dtype=jnp.float32)}
        targets = {
            "score": jax.random.normal(k2, (n,), dtype=jnp.float32),
            "weight": jax.random.uniform(k3, (n,), dtype=jnp.float32),
        }
        return outputs, targets

    kk, bb = 2.0, 0.5

    def ref_elem(outputs, targets, k, b):
        return targets["weight"] * (
            jnp.squeeze(outputs["score"]) - (targets["score"] - b) / k) ** 2

    key, sub = jax.random.split(key)
    # Small ragged case: 9 full 128-lane rows + 5-element tail; single row tile
    # (the second core's duplicate tile is fully masked).
    o1, t1 = make_inputs(9 * 128 + 5, sub)

    loss = jax.block_until_ready(
        WeightScoreLoss(k=kk, b=bb, reduction="mean")(o1, t1))
    ref = jnp.mean(ref_elem(o1, t1, kk, bb))
    assert jnp.allclose(loss, ref, rtol=1e-5, atol=1e-6), (loss, ref)

    loss_sum = jax.block_until_ready(
        WeightScoreLoss(k=kk, b=bb, reduction="sum")(o1, t1))
    ref_sum = jnp.sum(ref_elem(o1, t1, kk, bb))
    assert jnp.allclose(loss_sum, ref_sum, rtol=1e-5, atol=1e-4), (loss_sum, ref_sum)

    # Default-parameter module (k=1, b=0, mean).
    loss_def = jax.block_until_ready(WeightScoreLoss()(o1, t1))
    ref_def = jnp.mean(t1["weight"]
                       * (jnp.squeeze(o1["score"]) - t1["score"]) ** 2)
    assert jnp.allclose(loss_def, ref_def, rtol=1e-5, atol=1e-6), (loss_def, ref_def)

    # Standalone ScoreLoss reduced path (unweighted kernel variant).
    sl = jax.block_until_ready(
        ScoreLoss(k=kk, b=bb, reduction="mean")(o1["score"], t1["score"]))
    sl_ref = jnp.mean(
        (jnp.squeeze(o1["score"]) - (t1["score"] - bb) / kk) ** 2)
    assert jnp.allclose(sl, sl_ref, rtol=1e-5, atol=1e-6), (sl, sl_ref)

    # 'none' reduction (plain-JAX path).
    none_out = WeightScoreLoss(k=kk, b=bb, reduction="none")(o1, t1)
    assert jnp.allclose(none_out, ref_elem(o1, t1, kk, bb), rtol=1e-5, atol=1e-6)

    key, sub = jax.random.split(key)
    # Multi-tile case: rows = 4096 + 40 (one full 4096-row tile on core 0, one
    # masked 40-valid-row tail tile on core 1) plus a 3-element ragged tail.
    o2, t2 = make_inputs((TM_MAX + 40) * 128 + 3, sub)
    loss2 = jax.block_until_ready(
        WeightScoreLoss(k=kk, b=bb, reduction="mean")(o2, t2))
    ref2 = jnp.mean(ref_elem(o2, t2, kk, bb))
    assert jnp.allclose(loss2, ref2, rtol=1e-4, atol=1e-5), (loss2, ref2)

    loss2_sum = jax.block_until_ready(
        WeightScoreLoss(k=kk, b=bb, reduction="sum")(o2, t2))
    ref2_sum = jnp.sum(ref_elem(o2, t2, kk, bb))
    assert jnp.allclose(loss2_sum, ref2_sum, rtol=1e-4), (loss2_sum, ref2_sum)

    print("KERNEL_OK")
</pallas_src>

<mosaic_0001>
module attributes {stable_mosaic.version = 11 : i64} {
  func.func @_sse_kernel(%arg0: i32, %arg1: i32, %arg2: memref<9x128xf32, #tpu.memory_space<vmem>>, %arg3: memref<9x128xf32, #tpu.memory_space<vmem>>, %arg4: memref<9x128xf32, #tpu.memory_space<vmem>>, %arg5: memref<1x1x128xf32, #tpu.memory_space<vmem>>, %arg6: memref<1x128xf32, #tpu.memory_space<vmem>>) attributes {dimension_semantics = [#tpu.dimension_semantics<parallel>, #tpu.dimension_semantics<arbitrary>], iteration_bounds = array<i64: 2, 1>, scalar_prefetch = 0 : i64, scratch_operands = 1 : i64, tpu.core_type = #tpu.core_type<tc>, window_params = [{transform_indices = @transform_0, window_bounds = array<i64: 9, 128>}, {transform_indices = @transform_1, window_bounds = array<i64: 9, 128>}, {transform_indices = @transform_2, window_bounds = array<i64: 9, 128>}, {transform_indices = @transform_3, window_bounds = array<i64: 1, 1, 128>}]} {
    %c0_i32 = arith.constant 0 : i32
    %0 = arith.cmpi eq, %arg1, %c0_i32 : i32
    %1 = arith.extui %0 : i1 to i32
    %c0_i32_0 = arith.constant 0 : i32
    %2 = arith.cmpi ne, %1, %c0_i32_0 : i32
    scf.if %2 {
      %cst_13 = arith.constant 0.000000e+00 : f32
      %24 = vector.broadcast %cst_13 : f32 to vector<1x128xf32>
      %c0_14 = arith.constant 0 : index
      %c0_15 = arith.constant 0 : index
      %25 = vector.load %arg6[%c0_14, %c0_15] : memref<1x128xf32, #tpu.memory_space<vmem>>, vector<1x128xf32>
      tpu.vector_store %arg6[%c0_14, %c0_15], %24 {strides = array<i32>} : memref<1x128xf32, #tpu.memory_space<vmem>>, vector<1x128xf32>,
    } else {
    }
    %c0 = arith.constant 0 : index
    %c0_1 = arith.constant 0 : index
    %3 = vector.load %arg2[%c0, %c0_1] : memref<9x128xf32, #tpu.memory_space<vmem>>, vector<9x128xf32>
    %c0_2 = arith.constant 0 : index
    %c0_3 = arith.constant 0 : index
    %4 = vector.load %arg3[%c0_2, %c0_3] : memref<9x128xf32, #tpu.memory_space<vmem>>, vector<9x128xf32>
    %cst = arith.constant 5.000000e-01 : f32
    %5 = vector.broadcast %cst : f32 to vector<9x128xf32>
    %6 = arith.subf %4, %5 : vector<9x128xf32>
    %cst_4 = arith.constant 5.000000e-01 : f32
    %7 = vector.broadcast %cst_4 : f32 to vector<9x128xf32>
    %8 = arith.mulf %6, %7 : vector<9x128xf32>
    %9 = arith.subf %3, %8 : vector<9x128xf32>
    %10 = arith.mulf %9, %9 : vector<9x128xf32>
    %c0_5 = arith.constant 0 : index
    %c0_6 = arith.constant 0 : index
    %11 = vector.load %arg4[%c0_5, %c0_6] : memref<9x128xf32, #tpu.memory_space<vmem>>, vector<9x128xf32>
    %12 = arith.mulf %11, %10 : vector<9x128xf32>
    %c1_i32 = arith.constant 1 : i32
    %13 = arith.muli %arg0, %c1_i32 : i32
    %14 = arith.addi %13, %arg1 : i32
    %c0_i32_7 = arith.constant 0 : i32
    %15 = arith.cmpi slt, %14, %c0_i32_7 : i32
    %16 = arith.extui %15 : i1 to i32
    %c0_i32_8 = arith.constant 0 : i32
    %17 = arith.cmpi ne, %16, %c0_i32_8 : i32
    scf.if %17 {
      %c0_13 = arith.constant 0 : index
      %c0_14 = arith.constant 0 : index
      %24 = vector.load %arg6[%c0_13, %c0_14] : memref<1x128xf32, #tpu.memory_space<vmem>>, vector<1x128xf32>
      %cst_15 = arith.constant dense<0.000000e+00> : vector<128xf32>
      %25 = vector.multi_reduction <add>, %12, %cst_15 [0] : vector<9x128xf32> to vector<128xf32>
      %26 = vector.shape_cast %25 : vector<128xf32> to vector<1x128xf32>
      %27 = arith.addf %24, %26 : vector<1x128xf32>
      %c0_16 = arith.constant 0 : index
      %c0_17 = arith.constant 0 : index
      %28 = vector.load %arg6[%c0_16, %c0_17] : memref<1x128xf32, #tpu.memory_space<vmem>>, vector<1x128xf32>
      tpu.vector_store %arg6[%c0_16, %c0_17], %27 {strides = array<i32>} : memref<1x128xf32, #tpu.memory_space<vmem>>, vector<1x128xf32>,
    } else {
    }
    %c0_i32_9 = arith.constant 0 : i32
    %18 = arith.cmpi sge, %14, %c0_i32_9 : i32
    %19 = arith.extui %18 : i1 to i32
    %c0_i32_10 = arith.constant 0 : i32
    %20 = arith.cmpi ne, %19, %c0_i32_10 : i32
    scf.if %20 {
      %c9_i32 = arith.constant 9 : i32
      %24 = arith.muli %14, %c9_i32 : i32
      %25 = tpu.iota {dimensions = array<i32: 0>} : vector<9x128xi32>
      %26 = vector.broadcast %24 : i32 to vector<9x128xi32>
      %27 = arith.addi %26, %25 : vector<9x128xi32>
      %c9_i32_13 = arith.constant 9 : i32
      %28 = vector.broadcast %c9_i32_13 : i32 to vector<9x128xi32>
      %29 = arith.cmpi slt, %27, %28 : vector<9x128xi32>
      %cst_14 = arith.constant 0.000000e+00 : f32
      %30 = vector.broadcast %cst_14 : f32 to vector<9x128xf32>
      %31 = arith.select %29, %12, %30 : vector<9x128xi1>, vector<9x128xf32>
      %c0_15 = arith.constant 0 : index
      %c0_16 = arith.constant 0 : index
      %32 = vector.load %arg6[%c0_15, %c0_16] : memref<1x128xf32, #tpu.memory_space<vmem>>, vector<1x128xf32>
      %cst_17 = arith.constant dense<0.000000e+00> : vector<128xf32>
      %33 = vector.multi_reduction <add>, %31, %cst_17 [0] : vector<9x128xf32> to vector<128xf32>
      %34 = vector.shape_cast %33 : vector<128xf32> to vector<1x128xf32>
      %35 = arith.addf %32, %34 : vector<1x128xf32>
      %c0_18 = arith.constant 0 : index
      %c0_19 = arith.constant 0 : index
      %36 = vector.load %arg6[%c0_18, %c0_19] : memref<1x128xf32, #tpu.memory_space<vmem>>, vector<1x128xf32>
      tpu.vector_store %arg6[%c0_18, %c0_19], %35 {strides = array<i32>} : memref<1x128xf32, #tpu.memory_space<vmem>>, vector<1x128xf32>,
    } else {
    }
    %c0_i32_11 = arith.constant 0 : i32
    %21 = arith.cmpi eq, %arg1, %c0_i32_11 : i32
    %22 = arith.extui %21 : i1 to i32
    %c0_i32_12 = arith.constant 0 : i32
    %23 = arith.cmpi ne, %22, %c0_i32_12 : i32
    scf.if %23 {
      %c0_13 = arith.constant 0 : index
      %c0_14 = arith.constant 0 : index
      %24 = vector.load %arg6[%c0_13, %c0_14] : memref<1x128xf32, #tpu.memory_space<vmem>>, vector<1x128xf32>
      %cst_15 = arith.constant dense<0.000000e+00> : vector<128xf32>
      %25 = vector.multi_reduction <add>, %24, %cst_15 [0] : vector<1x128xf32> to vector<128xf32>
      %26 = vector.shape_cast %25 : vector<128xf32> to vector<1x128xf32>
      %27 = vector.shape_cast %26 : vector<1x128xf32> to vector<1x1x128xf32>
      %c0_16 = arith.constant 0 : index
      %c0_17 = arith.constant 0 : index
      %c0_18 = arith.constant 0 : index
      %28 = vector.load %arg5[%c0_16, %c0_17, %c0_18] : memref<1x1x128xf32, #tpu.memory_space<vmem>>, vector<1x1x128xf32>
      tpu.vector_store %arg5[%c0_16, %c0_17, %c0_18], %27 {strides = array<i32>} : memref<1x1x128xf32, #tpu.memory_space<vmem>>, vector<1x1x128xf32>,
    } else {
    }
    return
  }
  func.func @transform_0(%arg0: i32, %arg1: i32) -> (i32, i32) {
    %c1_i32 = arith.constant 1 : i32
    %0 = arith.muli %arg0, %c1_i32 : i32
    %1 = arith.addi %0, %arg1 : i32
    %c0_i32 = arith.constant 0 : i32
    %2 = arith.minsi %1, %c0_i32 : i32
    %c0_i32_0 = arith.constant 0 : i32
    %c0_i32_1 = arith.constant 0 : i32
    return %2, %c0_i32_0 : i32, i32
  }
  func.func @transform_1(%arg0: i32, %arg1: i32) -> (i32, i32) {
    %c1_i32 = arith.constant 1 : i32
    %0 = arith.muli %arg0, %c1_i32 : i32
    %1 = arith.addi %0, %arg1 : i32
    %c0_i32 = arith.constant 0 : i32
    %2 = arith.minsi %1, %c0_i32 : i32
    %c0_i32_0 = arith.constant 0 : i32
    %c0_i32_1 = arith.constant 0 : i32
    return %2, %c0_i32_0 : i32, i32
  }
  func.func @transform_2(%arg0: i32, %arg1: i32) -> (i32, i32) {
    %c1_i32 = arith.constant 1 : i32
    %0 = arith.muli %arg0, %c1_i32 : i32
    %1 = arith.addi %0, %arg1 : i32
    %c0_i32 = arith.constant 0 : i32
    %2 = arith.minsi %1, %c0_i32 : i32
    %c0_i32_0 = arith.constant 0 : i32
    %c0_i32_1 = arith.constant 0 : i32
    return %2, %c0_i32_0 : i32, i32
  }
  func.func @transform_3(%arg0: i32, %arg1: i32) -> (i32, i32, i32) {
    %c0_i32 = arith.constant 0 : i32
    %c0_i32_0 = arith.constant 0 : i32
    %c0_i32_1 = arith.constant 0 : i32
    return %arg0, %c0_i32, %c0_i32_0 : i32, i32, i32
  }
}

</mosaic_0001>

<llo_original>
// kernel: _sse_pallas.1
$region0: #{_sse_pallas.1}
  #allocation0 [shape = 'u32[]', space=smem, size = 0x4, offset = 0x4, fixed_abs, tag = 'smem constant byte address 0x4 - core index']
  #allocation1 [shape = 'u32[72,128]{1,0:T(1,128)}', space=vmem, size = 0x9000, scoped, tag = 'internal scratch']
  #allocation2 [shape = 'f32[1,128]{1,0:T(1,128)}', space=vmem, size = 0x200, scoped, tag = 'scratch operand']
  %s0 = inlined_call_operand.vmem [shape: f32[9,128], index: 0, kind: input, shape index: {}]
  %s1 = inlined_call_operand.vmem [shape: f32[9,128], index: 1, kind: input, shape index: {}]
  %s2 = inlined_call_operand.vmem [shape: f32[9,128], index: 2, kind: input, shape index: {}]
  %s3 = inlined_call_operand.vmem [shape: f32[2,1,128], index: 3, kind: output, shape index: {}]
  %s4 = sld [smem:[#allocation0]]
  $region61: #{_sse_pallas.1} parent=0
    _
  %s6 = ssub.s32 1, %s4
  %s7 = scalar_select 0, %s6, %s4
  loop: start=0, step=1, limit=4
  $region2: #{_sse_pallas.1} parent=0 // loop_pre_header
    _
  $region3: #{_sse_pallas.1} parent=0 // loop_header
    %s9 = sphi 0, %s13
    %p10 = scmp.ge.s32.totalorder %s9, 4
    %s16 = sphi 0, %s28
    %s17 = sphi 0, %s24
    %s18 = sphi 0, %s16
    %s19 = sphi 0, %s17
    %s20 = sphi 0, %s18
    %s21 = sphi 0, %s19
    %s37 = sphi 0, %s39
    %s40 = sphi 0, %s37
    %s41 = sphi 0, %s40
    %s57 = sphi 0, %s41
    %s69 = sphi 0, %s71
    %s72 = sphi 0, %s69
    %s73 = sphi 0, %s72
    %s89 = sphi 0, %s73
    %s101 = sphi 0, %s103
    %s104 = sphi 0, %s101
    %s105 = sphi 0, %s104
    %s121 = sphi 0, %s105
    %s127 = sphi 0, %s129
    %s130 = sphi 0, %s127
    %s131 = sphi 0, %s130
    %s147 = sphi 0, %s131
  $region4: #{_sse_pallas.1} parent=0 // loop_header_branch
    %12 = sbr.rel (%p10) target = $region8
  $region5: #{_sse_pallas.1} parent=0 // loop_body
    %s14 = ssub.s32 %s9, 1
    %s15 = ssub.s32 %s9, 2
    %s22 = sadd.s32 1, %s17
    %p23 = scmp.ge.s32.totalorder %s22, 1
    %s24 = scalar_select %p23, 0, %s22
    %s25 = sadd.s32 1, %s16
    %s26 = scalar_select %p23, %s25, %s16
    %p27 = scmp.ge.s32.totalorder %s26, 2
    %s28 = scalar_select %p27, 0, %s26
    %s29 = sadd.s32 %s16, %s17
    %p30 = scmp.lt.s32.totalorder %s29, 0
    %s31 = scalar_select %p30, %s29, 0
    %s32 = sadd.s32 %s28, %s24
    %p33 = scmp.lt.s32.totalorder %s32, 0
    %s34 = scalar_select %p33, %s32, 0
    %s35 = ssub.s32 %s31, %s34
    %p36 = scmp.eq.s32.totalorder %s35, 0
    %s38 = sadd.s32 %s37, 1
    %s39 = scalar_select %p36, %s37, %s38
    %p42 = pneg %p36
    %p43 = scmp.eq.s32.totalorder %s9, 1
    %p44 = por %p42, %p43
    %p45 = scmp.ne.s32.totalorder %s37, %s40
    %p46 = scmp.eq.s32.totalorder %s9, 0
    %p47 = por %p45, %p46
    %p48 = scmp.ne.s32.totalorder %s37, %s40
    %p49 = scmp.eq.s32.totalorder %s14, 1
    %p50 = por %p48, %p49
    %p51 = scmp.ne.s32.totalorder %s40, %s41
    %p52 = scmp.eq.s32.totalorder %s14, 0
    %p53 = por %p51, %p52
    %p54 = scmp.ne.s32.totalorder %s40, %s41
    %p55 = scmp.eq.s32.totalorder %s15, 1
    %p56 = por %p54, %p55
    %p58 = scmp.ne.s32.totalorder %s41, %s57
    %p59 = scmp.eq.s32.totalorder %s15, 0
    %p60 = por %p58, %p59
    %s61 = sadd.s32 %s16, %s17
    %p62 = scmp.lt.s32.totalorder %s61, 0
    %s63 = scalar_select %p62, %s61, 0
    %s64 = sadd.s32 %s28, %s24
    %p65 = scmp.lt.s32.totalorder %s64, 0
    %s66 = scalar_select %p65, %s64, 0
    %s67 = ssub.s32 %s63, %s66
    %p68 = scmp.eq.s32.totalorder %s67, 0
    %s70 = sadd.s32 %s69, 1
    %s71 = scalar_select %p68, %s69, %s70
    %p74 = pneg %p68
    %p75 = scmp.eq.s32.totalorder %s9, 1
    %p76 = por %p74, %p75
    %p77 = scmp.ne.s32.totalorder %s69, %s72
    %p78 = scmp.eq.s32.totalorder %s9, 0
    %p79 = por %p77, %p78
    %p80 = scmp.ne.s32.totalorder %s69, %s72
    %p81 = scmp.eq.s32.totalorder %s14, 1
    %p82 = por %p80, %p81
    %p83 = scmp.ne.s32.totalorder %s72, %s73
    %p84 = scmp.eq.s32.totalorder %s14, 0
    %p85 = por %p83, %p84
    %p86 = scmp.ne.s32.totalorder %s72, %s73
    %p87 = scmp.eq.s32.totalorder %s15, 1
    %p88 = por %p86, %p87
    %p90 = scmp.ne.s32.totalorder %s73, %s89
    %p91 = scmp.eq.s32.totalorder %s15, 0
    %p92 = por %p90, %p91
    %s93 = sadd.s32 %s16, %s17
    %p94 = scmp.lt.s32.totalorder %s93, 0
    %s95 = scalar_select %p94, %s93, 0
    %s96 = sadd.s32 %s28, %s24
    %p97 = scmp.lt.s32.totalorder %s96, 0
    %s98 = scalar_select %p97, %s96, 0
    %s99 = ssub.s32 %s95, %s98
    %p100 = scmp.eq.s32.totalorder %s99, 0
    %s102 = sadd.s32 %s101, 1
    %s103 = scalar_select %p100, %s101, %s102
    %p106 = pneg %p100
    %p107 = scmp.eq.s32.totalorder %s9, 1
    %p108 = por %p106, %p107
    %p109 = scmp.ne.s32.totalorder %s101, %s104
    %p110 = scmp.eq.s32.totalorder %s9, 0
    %p111 = por %p109, %p110
    %p112 = scmp.ne.s32.totalorder %s101, %s104
    %p113 = scmp.eq.s32.totalorder %s14, 1
    %p114 = por %p112, %p113
    %p115 = scmp.ne.s32.totalorder %s104, %s105
    %p116 = scmp.eq.s32.totalorder %s14, 0
    %p117 = por %p115, %p116
    %p118 = scmp.ne.s32.totalorder %s104, %s105
    %p119 = scmp.eq.s32.totalorder %s15, 1
    %p120 = por %p118, %p119
    %p122 = scmp.ne.s32.totalorder %s105, %s121
    %p123 = scmp.eq.s32.totalorder %s15, 0
    %p124 = por %p122, %p123
    %s125 = ssub.s32 %s16, %s28
    %p126 = scmp.eq.s32.totalorder %s125, 0
    %s128 = sadd.s32 %s127, 1
    %s129 = scalar_select %p126, %s127, %s128
    %p132 = pneg %p126
    %p133 = scmp.eq.s32.totalorder %s9, 1
    %p134 = por %p132, %p133
    %p135 = scmp.ne.s32.totalorder %s127, %s130
    %p136 = scmp.eq.s32.totalorder %s9, 0
    %p137 = por %p135, %p136
    %p138 = scmp.ne.s32.totalorder %s127, %s130
    %p139 = scmp.eq.s32.totalorder %s14, 1
    %p140 = por %p138, %p139
    %p141 = scmp.ne.s32.totalorder %s130, %s131
    %p142 = scmp.eq.s32.totalorder %s14, 0
    %p143 = por %p141, %p142
    %p144 = scmp.ne.s32.totalorder %s130, %s131
    %p145 = scmp.eq.s32.totalorder %s15, 1
    %p146 = por %p144, %p145
    %p148 = scmp.ne.s32.totalorder %s131, %s147
    %p149 = scmp.eq.s32.totalorder %s15, 0
    %p150 = por %p148, %p149
    %p151 = scmp.le.s32.totalorder 1, %s9
    %p152 = scmp.lt.s32.totalorder %s9, 3
    %p153 = pnand %p151, %p152
    %p154 = pneg %p153
    // Predicated region
    $region9: #{_sse_pallas.1} parent=5 // pred_check
      _
    $region10: #{_sse_pallas.1} parent=5 // pred_check_branch
      %156 = sbr.rel (%p153) target = $region12
    $region11: #{_sse_pallas.1} parent=5 // pred_region
      %s157 = ssub.s32 %s9, 1
    $region12: #{_sse_pallas.1} parent=5 // pred_fallthru
      _
    %p158 = scmp.lt.s32.totalorder %s9, 2
    // Predicated region
    $region13: #{_sse_pallas.1} parent=5 // pred_check
      %p159 = pneg %p158
    $region14: #{_sse_pallas.1} parent=5 // pred_check_branch
      %161 = sbr.rel (%p159) target = $region16
    $region15: #{_sse_pallas.1} parent=5 // pred_region
      // Predicated region
      $region17: #{_sse_pallas.1} parent=15 // pred_check
        %p162 = pneg %p47
      $region18: #{_sse_pallas.1} parent=15 // pred_check_branch
        %164 = sbr.rel (%p162) target = $region20
      $region19: #{_sse_pallas.1} parent=15 // pred_region
        %s165 = sadd.s32 %s16, %s17
        %p166 = scmp.lt.s32.totalorder %s165, 0
        %s167 = scalar_select %p166, %s165, 0
        %s168 = smul.u32 2, %s167
        %p169 = scmp.lt.s32.totalorder %s168, 1
        %s170 = scalar_select %p169, %s168, 1
        %s171 = smul.addr %s170, 8
        %s172 = scalar_lea.vmem %s0, %s171
        %s173 = sadd.s32 %s16, %s17
        %p174 = scmp.lt.s32.totalorder %s173, 0
        %s175 = scalar_select %p174, %s173, 0
        %s176 = smul.u32 2, %s175
      $region20: #{_sse_pallas.1} parent=15 // pred_fallthru
        _
      // Predicated region
      $region21: #{_sse_pallas.1} parent=15 // pred_check
        %p177 = pneg %p79
      $region22: #{_sse_pallas.1} parent=15 // pred_check_branch
        %179 = sbr.rel (%p177) target = $region24
      $region23: #{_sse_pallas.1} parent=15 // pred_region
        %s180 = sadd.s32 %s16, %s17
        %p181 = scmp.lt.s32.totalorder %s180, 0
        %s182 = scalar_select %p181, %s180, 0
        %s183 = smul.u32 2, %s182
        %p184 = scmp.lt.s32.totalorder %s183, 1
        %s185 = scalar_select %p184, %s183, 1
        %s186 = smul.addr %s185, 8
        %s187 = scalar_lea.vmem %s1, %s186
        %s188 = sadd.s32 %s16, %s17
        %p189 = scmp.lt.s32.totalorder %s188, 0
        %s190 = scalar_select %p189, %s188, 0
        %s191 = smul.u32 2, %s190
      $region24: #{_sse_pallas.1} parent=15 // pred_fallthru
        _
      // Predicated region
      $region25: #{_sse_pallas.1} parent=15 // pred_check
        %p192 = pneg %p111
      $region26: #{_sse_pallas.1} parent=15 // pred_check_branch
        %194 = sbr.rel (%p192) target = $region28
      $region27: #{_sse_pallas.1} parent=15 // pred_region
        %s195 = sadd.s32 %s16, %s17
        %p196 = scmp.lt.s32.totalorder %s195, 0
        %s197 = scalar_select %p196, %s195, 0
        %s198 = smul.u32 2, %s197
        %p199 = scmp.lt.s32.totalorder %s198, 1
        %s200 = scalar_select %p199, %s198, 1
        %s201 = smul.addr %s200, 8
        %s202 = scalar_lea.vmem %s2, %s201
        %s203 = sadd.s32 %s16, %s17
        %p204 = scmp.lt.s32.totalorder %s203, 0
        %s205 = scalar_select %p204, %s203, 0
        %s206 = smul.u32 2, %s205
      $region28: #{_sse_pallas.1} parent=15 // pred_fallthru
        _
    $region16: #{_sse_pallas.1} parent=5 // pred_fallthru
      _
    %p207 = scmp.le.s32.totalorder 1, %s9
    %p208 = scmp.lt.s32.totalorder %s9, 3
    %p209 = pnand %p207, %p208
    %p210 = pneg %p209
    // Predicated region
    $region29: #{_sse_pallas.1} parent=5 // pred_check
      _
    $region30: #{_sse_pallas.1} parent=5 // pred_check_branch
      %212 = sbr.rel (%p209) target = $region32
    $region31: #{_sse_pallas.1} parent=5 // pred_region
      %s213 = ssub.s32 %s9, 1
      %s214 = sadd.s32 %s18, %s19
      %p215 = scmp.lt.s32.totalorder %s214, 0
      %s216 = scalar_select %p215, %s214, 0
      %s217 = smul.u32 2, %s216
      %p218 = scmp.lt.s32.totalorder %s217, 1
      %s219 = scalar_select %p218, %s217, 1
      %s220 = smul.addr %s219, 8
      %s221 = scalar_lea.vmem %s0, %s220
      %p222 = pneg %p53
      %p223 = pneg %p50
      %s224 = sadd.s32 %s18, %s19
      %p225 = scmp.lt.s32.totalorder %s224, 0
      %s226 = scalar_select %p225, %s224, 0
      %s227 = smul.u32 2, %s226
      %p228 = scmp.lt.s32.totalorder %s227, 1
      %s229 = scalar_select %p228, %s227, 1
      %s230 = smul.addr %s229, 8
      %s231 = scalar_lea.vmem %s1, %s230
      %p232 = pneg %p85
      %p233 = pneg %p82
      %s234 = sadd.s32 %s18, %s19
      %p235 = scmp.lt.s32.totalorder %s234, 0
      %s236 = scalar_select %p235, %s234, 0
      %s237 = smul.u32 2, %s236
      %p238 = scmp.lt.s32.totalorder %s237, 1
      %s239 = scalar_select %p238, %s237, 1
      %s240 = smul.addr %s239, 8
      %s241 = scalar_lea.vmem %s2, %s240
      %p242 = pneg %p117
      %p243 = pneg %p114
      %p244 = pneg %p143
      %p245 = pneg %p140
      %p246 = scmp.lt.s32.totalorder %s18, 1
      %s247 = scalar_select %p246, %s18, 1
      %s248 = scalar_lea.vmem %s3, %s247
      %s249 = sadd.s32 %s18, %s19
      %p250 = scmp.lt.s32.totalorder %s249, 0
      %s251 = scalar_select %p250, %s249, 0
      %s252 = smul.u32 2, %s251
      %p253 = scmp.lt.s32.totalorder %s252, 1
      %s254 = scalar_select %p253, %s252, 1
      %s255 = smul.addr %s254, 8
      %s256 = scalar_lea.vmem %s0, %s255
      %s257 = sadd.s32 %s18, %s19
      %p258 = scmp.lt.s32.totalorder %s257, 0
      %s259 = scalar_select %p258, %s257, 0
      %s260 = smul.u32 2, %s259
      %s261 = sadd.s32 %s18, %s19
      %p262 = scmp.lt.s32.totalorder %s261, 0
      %s263 = scalar_select %p262, %s261, 0
      %s264 = smul.u32 2, %s263
      %p265 = scmp.lt.s32.totalorder %s264, 1
      %s266 = scalar_select %p265, %s264, 1
      %s267 = smul.addr %s266, 8
      %s268 = scalar_lea.vmem %s1, %s267
      %s269 = sadd.s32 %s18, %s19
      %p270 = scmp.lt.s32.totalorder %s269, 0
      %s271 = scalar_select %p270, %s269, 0
      %s272 = smul.u32 2, %s271
      %s273 = sadd.s32 %s18, %s19
      %p274 = scmp.lt.s32.totalorder %s273, 0
      %s275 = scalar_select %p274, %s273, 0
      %s276 = smul.u32 2, %s275
      %p277 = scmp.lt.s32.totalorder %s276, 1
      %s278 = scalar_select %p277, %s276, 1
      %s279 = smul.addr %s278, 8
      %s280 = scalar_lea.vmem %s2, %s279
      %s281 = sadd.s32 %s18, %s19
      %p282 = scmp.lt.s32.totalorder %s281, 0
      %s283 = scalar_select %p282, %s281, 0
      %s284 = smul.u32 2, %s283
      %p285 = scmp.lt.s32.totalorder %s18, 1
      %s286 = scalar_select %p285, %s18, 1
      %s287 = scalar_lea.vmem %s3, %s286
      %p288 = scmp.eq.s32.totalorder %s19, 0
      // Predicated region
      $region33: #{_sse_pallas.1} parent=31 // pred_check
        %p289 = pneg %p288
      $region34: #{_sse_pallas.1} parent=31 // pred_check_branch
        %291 = sbr.rel (%p289) target = $region36
      $region35: #{_sse_pallas.1} parent=31 // pred_region
        %292 = vst [vmem:[#allocation2] sm:$0x1] 0.0
      $region36: #{_sse_pallas.1} parent=31 // pred_fallthru
        _
      %v293 = vld [vmem:[%s256] sm:$0xff]
      %v294 = vld [vmem:[%s256 + $0x8] sm:$0x1]
      %v295 = vld [vmem:[%s268] sm:$0xff]
      %v296 = vld [vmem:[%s268 + $0x8] sm:$0x1]
      %v297 = vsub.f32 %v295, 0.5
      %v298 = vsub.f32 %v296, 0.5
      %v299 = vmul.f32 %v297, 0.5
      %v300 = vmul.f32 %v298, 0.5
      %v301 = vsub.f32 %v293, %v299
      %v302 = vsub.f32 %v294, %v300
      %v303 = vmul.f32 %v301, %v301
      %v304 = vmul.f32 %v302, %v302
      %v305 = vld [vmem:[%s280] sm:$0xff]
      %v306 = vld [vmem:[%s280 + $0x8] sm:$0x1]
      %v307 = vmul.f32 %v305, %v303
      %v308 = vmul.f32 %v306, %v304
      %s309 = sadd.s32 %s18, %s19
      %p310 = scmp.lt.s32.totalorder %s309, 0
      // Predicated region
      $region37: #{_sse_pallas.1} parent=31 // pred_check
        %p311 = pneg %p310
      $region38: #{_sse_pallas.1} parent=31 // pred_check_branch
        %313 = sbr.rel (%p311) target = $region40
      $region39: #{_sse_pallas.1} parent=31 // pred_region
        %v314 = vld [vmem:[#allocation2] sm:$0x1]
        %vm315 = vcmask 1040384
        %v316 = vsel %vm315, %v308, 0.0
        %v317 = vadd.f32 %v307, %v316
        %v318 = vrot.slane %v317, 4
        %v319 = vadd.f32 %v317, %v318
        %v320 = vrot.slane %v319, 2
        %v321 = vadd.f32 %v319, %v320
        %v322 = vrot.slane %v321, 1
        %v323 = vadd.f32 %v321, %v322
        %v324 = vadd.f32 %v314, %v323
        %325 = vst [vmem:[#allocation2] sm:$0x1] %v324
      $region40: #{_sse_pallas.1} parent=31 // pred_fallthru
        _
      %p326 = scmp.ge.s32.totalorder %s309, 0
      // Predicated region
      $region41: #{_sse_pallas.1} parent=31 // pred_check
        %p327 = pneg %p326
      $region42: #{_sse_pallas.1} parent=31 // pred_check_branch
        %329 = sbr.rel (%p327) target = $region44
      $region43: #{_sse_pallas.1} parent=31 // pred_region
        %s330 = smul.u32 %s309, 9
        %v331 = vlaneseq
        %v332 = vshrl.u32 %v331, 7
        %v333 = vadd.s32 %v332, 8
        %v334 = vstv %s330
        %v335 = vadd.s32 %v334, %v332
        %v336 = vadd.s32 %v334, %v333
        %vm337 = vcmp.lt.s32.totalorder %v335, 9
        %vm338 = vcmp.lt.s32.totalorder %v336, 9
        %v339 = vsel %vm337, %v307, 0.0
        %v340 = vsel %vm338, %v308, 0.0
        %v341 = vld [vmem:[#allocation2] sm:$0x1]
        %vm342 = vcmask 1040384
        %v343 = vsel %vm342, %v340, 0.0
        %v344 = vadd.f32 %v339, %v343
        %v345 = vrot.slane %v344, 4
        %v346 = vadd.f32 %v344, %v345
        %v347 = vrot.slane %v346, 2
        %v348 = vadd.f32 %v346, %v347
        %v349 = vrot.slane %v348, 1
        %v350 = vadd.f32 %v348, %v349
        %v351 = vadd.f32 %v341, %v350
        %352 = vst [vmem:[#allocation2] sm:$0x1] %v351
      $region44: #{_sse_pallas.1} parent=31 // pred_fallthru
        _
      // Predicated region
      $region45: #{_sse_pallas.1} parent=31 // pred_check
        %p353 = pneg %p288
      $region46: #{_sse_pallas.1} parent=31 // pred_check_branch
        %355 = sbr.rel (%p353) target = $region48
      $region47: #{_sse_pallas.1} parent=31 // pred_region
        %v356 = vld [vmem:[#allocation2] sm:$0x1]
        %v357 = vadd.f32 %v356, 0.0
        %358 = vst [vmem:[%s287] sm:$0x1] %v357
      $region48: #{_sse_pallas.1} parent=31 // pred_fallthru
        _
      %p359 = scmp.lt.s32.totalorder %s18, 1
      %s360 = scalar_select %p359, %s18, 1
      %s361 = scalar_lea.vmem %s3, %s360
      // Predicated region
      $region49: #{_sse_pallas.1} parent=31 // pred_check
        %p362 = pneg %p140
      $region50: #{_sse_pallas.1} parent=31 // pred_check_branch
        %364 = sbr.rel (%p362) target = $region52
      $region51: #{_sse_pallas.1} parent=31 // pred_region
        _
      $region52: #{_sse_pallas.1} parent=31 // pred_fallthru
        _
    $region32: #{_sse_pallas.1} parent=5 // pred_fallthru
      _
    %p365 = scmp.le.s32.totalorder 2, %s9
    // Predicated region
    $region53: #{_sse_pallas.1} parent=5 // pred_check
      %p366 = pneg %p365
    $region54: #{_sse_pallas.1} parent=5 // pred_check_branch
      %368 = sbr.rel (%p366) target = $region56
    $region55: #{_sse_pallas.1} parent=5 // pred_region
      %s369 = ssub.s32 %s9, 2
      // Predicated region
      $region57: #{_sse_pallas.1} parent=55 // pred_check
        %p370 = pneg %p146
      $region58: #{_sse_pallas.1} parent=55 // pred_check_branch
        %372 = sbr.rel (%p370) target = $region60
      $region59: #{_sse_pallas.1} parent=55 // pred_region
        %p373 = scmp.lt.s32.totalorder %s20, 1
        %s374 = scalar_select %p373, %s20, 1
        %s375 = scalar_lea.vmem %s3, %s374
      $region60: #{_sse_pallas.1} parent=55 // pred_fallthru
        _
    $region56: #{_sse_pallas.1} parent=5 // pred_fallthru
      _
  $region6: #{_sse_pallas.1} parent=0 // loop_footer
    %s13 = sadd.s32 1, %s9
  $region7: #{_sse_pallas.1} parent=0 // loop_footer_branch
    %8 = sbr.rel target = $region3
  $region8: #{_sse_pallas.1} parent=0 // loop_exit
    _

</llo_original>
